<compile_context>
chip_gen: v7x
topology: tpu7x:2x2x1
jax: 0.10.0
libtpu: 0.0.40
codegen_flags: <defaults>
</compile_context>

<pallas_src>
import functools

import jax
import jax.numpy as jnp
import numpy as np
from jax import lax
from jax.experimental import pallas as pl
from jax.experimental.pallas import tpu as pltpu

EPS = 1e-5
LANES = 128


def _round_up(x, m):
    return (x + m - 1) // m * m


def _pick_tile_m(m, target):
    """Largest divisor of m that is a multiple of 8 and <= target (else m)."""
    cands = [d for d in range(8, min(m, target) + 1, 8) if m % d == 0]
    return max(cands) if cands else m


def _pad2(w, rows, cols):
    return jnp.pad(w, ((0, rows - w.shape[0]), (0, cols - w.shape[1])))


# --------------------------------------------------------------------------
# Stage A: conv1 (1x1) + shortcut conv (1x1), per-tile BN partial stats.
# --------------------------------------------------------------------------
def _stage_a_kernel(x_ref, w1_ref, ws_ref, y1_ref, ysc_ref, st1_ref, stsc_ref):
    x = x_ref[...]                                        # (TM, Cin_p) bf16
    y1 = jnp.dot(x, w1_ref[...], preferred_element_type=jnp.float32)
    ysc = jnp.dot(x, ws_ref[...], preferred_element_type=jnp.float32)
    y1_ref[...] = y1
    ysc_ref[...] = ysc
    # Per-tile [sum, sum_sq] partials (single read of y; finalized in wrapper).
    st1_ref[0] = jnp.concatenate(
        [jnp.sum(y1, axis=0, keepdims=True),
         jnp.sum(y1 * y1, axis=0, keepdims=True)], axis=0)
    stsc_ref[0] = jnp.concatenate(
        [jnp.sum(ysc, axis=0, keepdims=True),
         jnp.sum(ysc * ysc, axis=0, keepdims=True)], axis=0)


# --------------------------------------------------------------------------
# Stage B: bn1 + relu -> conv2 (3x3, pad=1, stride=1), one image per grid step.
# --------------------------------------------------------------------------
def _stage_b_kernel(H, W, y1_ref, w2_ref, sb1_ref, y2_ref, st2_ref, pad_ref):
    HW = H * W
    P = y1_ref.shape[-1]

    sb = sb1_ref[...]                                     # (2, P): scale, shift
    h1 = jnp.maximum(y1_ref[0] * sb[0:1, :] + sb[1:2, :], 0.0)   # (HW, P) f32

    # h1 goes straight into the padded scratch (single aligned store); only the
    # two W-row margin strips (image rows -1 and H) are zeroed.
    pad_ref[pl.ds(0, W), :] = jnp.zeros((W, P), jnp.float32)
    pad_ref[pl.ds((H + 1) * W, W), :] = jnp.zeros((W, P), jnp.float32)
    pad_ref[pl.ds(W, HW), :] = h1

    # Column-validity masks, computed once per image (dx = +-1 taps only).
    col = lax.broadcasted_iota(jnp.int32, (HW, 1), 0) % W
    mask_l = col >= 1          # reading column (w-1) is inside the image
    mask_r = col <= W - 2      # reading column (w+1) is inside the image

    acc = jnp.zeros((HW, P), jnp.float32)
    for ky in range(3):
        # dy-aligned slice (static offset, multiple of W); vertical padding is
        # already baked into the zeroed margins, so no dy mask is needed.
        sl = pad_ref[pl.ds(ky * W, HW), :]
        for kx in range(3):
            if kx == 0:
                # need sl[m-1]: roll forward by 1 (XLU), wrap row masked.
                t = jnp.where(mask_l, pltpu.roll(sl, shift=1, axis=0), 0.0)
            elif kx == 2:
                # need sl[m+1]: roll by HW-1 (== -1 mod HW, keeps shift >= 0).
                t = jnp.where(mask_r, pltpu.roll(sl, shift=HW - 1, axis=0), 0.0)
            else:
                t = sl
            acc = acc + jnp.dot(t.astype(jnp.bfloat16), w2_ref[ky * 3 + kx],
                                preferred_element_type=jnp.float32)

    y2_ref[0] = acc
    st2_ref[0] = jnp.concatenate(
        [jnp.sum(acc, axis=0, keepdims=True),
         jnp.sum(acc * acc, axis=0, keepdims=True)], axis=0)


# --------------------------------------------------------------------------
# Stage C: bn2 + relu -> conv3 (1x1), per-tile BN partial stats.
# --------------------------------------------------------------------------
def _stage_c_kernel(y2_ref, w3_ref, sb2_ref, y3_ref, st3_ref):
    sb = sb2_ref[...]
    h2 = jnp.maximum(y2_ref[...] * sb[0:1, :] + sb[1:2, :], 0.0)
    y3 = jnp.dot(h2.astype(jnp.bfloat16), w3_ref[...],
                 preferred_element_type=jnp.float32)
    y3_ref[...] = y3
    st3_ref[0] = jnp.concatenate(
        [jnp.sum(y3, axis=0, keepdims=True),
         jnp.sum(y3 * y3, axis=0, keepdims=True)], axis=0)


# --------------------------------------------------------------------------
# Stage D: bn3 + shortcut bn + residual add + relu.
# --------------------------------------------------------------------------
def _stage_d_kernel(y3_ref, ysc_ref, sb3_ref, sbsc_ref, o_ref):
    a = sb3_ref[...]
    s = sbsc_ref[...]
    h3 = y3_ref[...] * a[0:1, :] + a[1:2, :]
    sc = ysc_ref[...] * s[0:1, :] + s[1:2, :]
    o_ref[...] = jnp.maximum(h3 + sc, 0.0)


def _fold_bn(partial_stats, gamma, beta, count):
    """(T, 2, C) per-tile [sum, sum_sq] -> (2, C) [scale, shift] in f32."""
    s = jnp.sum(partial_stats, axis=0)                    # (2, C)
    mean = s[0] / count
    # NOTE: E[x^2]-E[x]^2 (single-read, matches the fused-stats kernels); the
    # clamp guards tiny negative values from cancellation.
    # TODO(synk): Welford / centred two-pass variance for very large activations.
    var = jnp.maximum(s[1] / count - mean * mean, 0.0)
    scale = gamma.reshape(-1) * lax.rsqrt(var + EPS)
    shift = beta.reshape(-1) - mean * scale
    return jnp.stack([scale, shift], axis=0).astype(jnp.float32)


def bottleneck_forward(x_nchw, params, planes, expansion=4, tile_rows=512):
    N, Cin, H, W = x_nchw.shape
    M = N * H * W
    HW = H * W
    Cout = expansion * planes

    cin_p = _round_up(Cin, LANES)
    p_p = _round_up(planes, LANES)
    cout_p = _round_up(Cout, LANES)

    # Channels-last, flattened, channel-padded; bf16 operands for the MXU.
    x2d = jnp.transpose(x_nchw, (0, 2, 3, 1)).reshape(M, Cin).astype(jnp.float32)
    x2d = jnp.pad(x2d, ((0, 0), (0, cin_p - Cin))).astype(jnp.bfloat16)

    w1 = _pad2(params["w1"], cin_p, p_p).astype(jnp.bfloat16)
    ws = _pad2(params["ws"], cin_p, cout_p).astype(jnp.bfloat16)
    w3 = _pad2(params["w3"], p_p, cout_p).astype(jnp.bfloat16)
    w2 = jnp.pad(params["w2"], ((0, 0), (0, p_p - planes),
                                (0, p_p - planes))).astype(jnp.bfloat16)

    def padc(v, c):   # (1,C) -> (1,C_p); zero gamma/beta keeps padded channels 0
        return jnp.pad(v, ((0, 0), (0, c - v.shape[1])))

    g1, b1 = padc(params["g1"], p_p), padc(params["b1"], p_p)
    g2, b2 = padc(params["g2"], p_p), padc(params["b2"], p_p)
    g3, b3 = padc(params["g3"], cout_p), padc(params["b3"], cout_p)
    gs, bs = padc(params["gs"], cout_p), padc(params["bs"], cout_p)

    tm = _pick_tile_m(M, tile_rows)
    nm = M // tm

    cparams = pltpu.CompilerParams(
        dimension_semantics=("parallel",),          # shards across TCs on v7x
        vmem_limit_bytes=48 * 1024 * 1024,          # under v7x's 64 MiB / TC
    )
    full2 = lambda *_: (0, 0)
    full3 = lambda *_: (0, 0, 0)
    row2 = lambda i: (i, 0)
    row3 = lambda i: (i, 0, 0)

    # ---- stage A ----------------------------------------------------------
    y1, ysc, st1p, stscp = pl.pallas_call(
        _stage_a_kernel,
        grid=(nm,),
        in_specs=[pl.BlockSpec((tm, cin_p), row2),
                  pl.BlockSpec((cin_p, p_p), full2),
                  pl.BlockSpec((cin_p, cout_p), full2)],
        out_specs=(pl.BlockSpec((tm, p_p), row2),
                   pl.BlockSpec((tm, cout_p), row2),
                   pl.BlockSpec((1, 2, p_p), row3),
                   pl.BlockSpec((1, 2, cout_p), row3)),
        out_shape=(jax.ShapeDtypeStruct((M, p_p), jnp.float32),
                   jax.ShapeDtypeStruct((M, cout_p), jnp.float32),
                   jax.ShapeDtypeStruct((nm, 2, p_p), jnp.float32),
                   jax.ShapeDtypeStruct((nm, 2, cout_p), jnp.float32)),
        compiler_params=cparams,
        cost_estimate=pl.CostEstimate(
            flops=2 * M * cin_p * (p_p + cout_p), transcendentals=0,
            bytes_accessed=int(x2d.size) * 2 + M * (p_p + cout_p) * 4),
    )(x2d, w1, ws)

    sb1 = _fold_bn(st1p, g1, b1, M)
    sbsc = _fold_bn(stscp, gs, bs, M)

    # ---- stage B ----------------------------------------------------------
    kernel_b = functools.partial(_stage_b_kernel, H, W)
    y2, st2p = pl.pallas_call(
        kernel_b,
        grid=(N,),
        in_specs=[pl.BlockSpec((1, HW, p_p), row3),
                  pl.BlockSpec((9, p_p, p_p), full3),
                  pl.BlockSpec((2, p_p), full2)],
        out_specs=(pl.BlockSpec((1, HW, p_p), row3),
                   pl.BlockSpec((1, 2, p_p), row3)),
        out_shape=(jax.ShapeDtypeStruct((N, HW, p_p), jnp.float32),
                   jax.ShapeDtypeStruct((N, 2, p_p), jnp.float32)),
        scratch_shapes=[pltpu.VMEM(((H + 2) * W, p_p), jnp.float32)],
        compiler_params=cparams,
        cost_estimate=pl.CostEstimate(
            flops=2 * M * 9 * p_p * p_p, transcendentals=0,
            bytes_accessed=2 * M * p_p * 4 + 9 * p_p * p_p * 2),
    )(y1.reshape(N, HW, p_p), w2, sb1)

    sb2 = _fold_bn(st2p, g2, b2, M)

    # ---- stage C ----------------------------------------------------------
    y3, st3p = pl.pallas_call(
        _stage_c_kernel,
        grid=(nm,),
        in_specs=[pl.BlockSpec((tm, p_p), row2),
                  pl.BlockSpec((p_p, cout_p), full2),
                  pl.BlockSpec((2, p_p), full2)],
        out_specs=(pl.BlockSpec((tm, cout_p), row2),
                   pl.BlockSpec((1, 2, cout_p), row3)),
        out_shape=(jax.ShapeDtypeStruct((M, cout_p), jnp.float32),
                   jax.ShapeDtypeStruct((nm, 2, cout_p), jnp.float32)),
        compiler_params=cparams,
        cost_estimate=pl.CostEstimate(
            flops=2 * M * p_p * cout_p, transcendentals=0,
            bytes_accessed=M * (p_p + cout_p) * 4 + p_p * cout_p * 2),
    )(y2.reshape(M, p_p), w3, sb2)

    sb3 = _fold_bn(st3p, g3, b3, M)

    # ---- stage D ----------------------------------------------------------
    out2d = pl.pallas_call(
        _stage_d_kernel,
        grid=(nm,),
        in_specs=[pl.BlockSpec((tm, cout_p), row2),
                  pl.BlockSpec((tm, cout_p), row2),
                  pl.BlockSpec((2, cout_p), full2),
                  pl.BlockSpec((2, cout_p), full2)],
        out_specs=pl.BlockSpec((tm, cout_p), row2),
        out_shape=jax.ShapeDtypeStruct((M, cout_p), jnp.float32),
        compiler_params=cparams,
        cost_estimate=pl.CostEstimate(
            flops=6 * M * cout_p, transcendentals=0,
            bytes_accessed=3 * M * cout_p * 4),
    )(y3, ysc, sb3, sbsc)

    out = out2d[:, :Cout].reshape(N, H, W, Cout)
    return jnp.transpose(out, (0, 3, 1, 2))


def bottleneck_reference(x_nchw, params, planes, expansion=4):
    """Pure-JAX reference using the same precision policy as the kernels
    (bf16 matmul operands, f32 accumulation, f32 BN/elementwise math)."""
    N, Cin, H, W = x_nchw.shape
    x = jnp.transpose(x_nchw, (0, 2, 3, 1)).astype(jnp.float32)

    def bf16(v):
        return v.astype(jnp.bfloat16).astype(jnp.float32)

    def mm(a, b):
        return jnp.einsum("nhwc,cd->nhwd", bf16(a), bf16(b),
                          precision=lax.Precision.HIGHEST)

    def bn(y, g, b):
        mean = jnp.mean(y, axis=(0, 1, 2), keepdims=True)
        var = jnp.mean(y * y, axis=(0, 1, 2), keepdims=True) - mean * mean
        return (y - mean) * lax.rsqrt(var + EPS) * g + b

    h1 = jax.nn.relu(bn(mm(x, params["w1"]), params["g1"], params["b1"]))
    padded = jnp.pad(bf16(h1), ((0, 0), (1, 1), (1, 1), (0, 0)))
    acc = jnp.zeros((N, H, W, planes), jnp.float32)
    for ky in range(3):
        for kx in range(3):
            acc = acc + jnp.einsum(
                "nhwc,cd->nhwd", padded[:, ky:ky + H, kx:kx + W, :],
                bf16(params["w2"][ky * 3 + kx]), precision=lax.Precision.HIGHEST)
    h2 = jax.nn.relu(bn(acc, params["g2"], params["b2"]))
    h3 = bn(mm(h2, params["w3"]), params["g3"], params["b3"])
    sc = bn(mm(x, params["ws"]), params["gs"], params["bs"])
    return jnp.transpose(jax.nn.relu(h3 + sc), (0, 3, 1, 2))


def init_params(key, in_planes, planes, expansion=4):
    cout = expansion * planes
    ks = jax.random.split(key, 10)
    return {
        # conv weights stored as (Cin, Cout) matmul matrices;
        # w2[ky*3+kx, cin, cout] corresponds to torch conv2.weight[cout, cin, ky, kx].
        "w1": 0.1 * jax.random.normal(ks[0], (in_planes, planes), jnp.float32),
        "w2": 0.1 * jax.random.normal(ks[1], (9, planes, planes), jnp.float32),
        "w3": 0.1 * jax.random.normal(ks[2], (planes, cout), jnp.float32),
        "ws": 0.1 * jax.random.normal(ks[3], (in_planes, cout), jnp.float32),
        "g1": 1.0 + 0.1 * jax.random.normal(ks[4], (1, planes), jnp.float32),
        "b1": 0.1 * jax.random.normal(ks[5], (1, planes), jnp.float32),
        "g2": 1.0 + 0.1 * jax.random.normal(ks[6], (1, planes), jnp.float32),
        "b2": 0.1 * jax.random.normal(ks[7], (1, planes), jnp.float32),
        "g3": 1.0 + 0.1 * jax.random.normal(ks[8], (1, cout), jnp.float32),
        "b3": 0.1 * jax.random.normal(ks[9], (1, cout), jnp.float32),
        "gs": jnp.ones((1, cout), jnp.float32),
        "bs": jnp.zeros((1, cout), jnp.float32),
    }


if __name__ == "__main__":
    N, Cin, H, W = 2, 4, 16, 16
    planes, expansion = 2, 4  # placeholder, reset below
    planes, expansion = 4, 4

    key = jax.random.PRNGKey(0)
    kx, kp = jax.random.split(key)
    x = jax.random.normal(kx, (N, Cin, H, W), jnp.float32)
    params = init_params(kp, Cin, planes, expansion)

    # tile_rows=128 gives 4 row-tiles over M=512 so the multi-tile grid and the
    # cross-tile BN stat accumulation are exercised; use 512-1024 at real sizes.
    out = bottleneck_forward(x, params, planes, expansion, tile_rows=128)
    out = jax.block_until_ready(out)

    ref = bottleneck_reference(x, params, planes, expansion)
    # Tolerance covers bf16 rounding of intermediate activations (kernel and
    # reference can land on opposite sides of a bf16 ulp for a few elements).
    np.testing.assert_allclose(np.asarray(out), np.asarray(ref),
                               rtol=1e-2, atol=1e-2)
    assert out.shape == (N, expansion * planes, H, W)
    print("KERNEL_OK")
</pallas_src>

<mosaic_0001>
module attributes {stable_mosaic.version = 11 : i64} {
  func.func @_stage_a_kernel(%arg0: i32, %arg1: memref<128x128xbf16, #tpu.memory_space<vmem>>, %arg2: memref<128x128xbf16, #tpu.memory_space<vmem>>, %arg3: memref<128x128xbf16, #tpu.memory_space<vmem>>, %arg4: memref<128x128xf32, #tpu.memory_space<vmem>>, %arg5: memref<128x128xf32, #tpu.memory_space<vmem>>, %arg6: memref<1x2x128xf32, #tpu.memory_space<vmem>>, %arg7: memref<1x2x128xf32, #tpu.memory_space<vmem>>) attributes {dimension_semantics = [#tpu.dimension_semantics<parallel>], iteration_bounds = array<i64: 4>, scalar_prefetch = 0 : i64, scratch_operands = 0 : i64, tpu.core_type = #tpu.core_type<tc>, window_params = [{transform_indices = @transform_0, window_bounds = array<i64: 128, 128>}, {pipeline_mode = #tpu.pipeline_mode<synchronous>, transform_indices = @transform_1, window_bounds = array<i64: 128, 128>}, {pipeline_mode = #tpu.pipeline_mode<synchronous>, transform_indices = @transform_2, window_bounds = array<i64: 128, 128>}, {transform_indices = @transform_3, window_bounds = array<i64: 128, 128>}, {transform_indices = @transform_4, window_bounds = array<i64: 128, 128>}, {transform_indices = @transform_5, window_bounds = array<i64: 1, 2, 128>}, {transform_indices = @transform_6, window_bounds = array<i64: 1, 2, 128>}]} {
    %c0 = arith.constant 0 : index
    %c0_0 = arith.constant 0 : index
    %0 = vector.load %arg1[%c0, %c0_0] : memref<128x128xbf16, #tpu.memory_space<vmem>>, vector<128x128xbf16>
    %c0_1 = arith.constant 0 : index
    %c0_2 = arith.constant 0 : index
    %1 = vector.load %arg2[%c0_1, %c0_2] : memref<128x128xbf16, #tpu.memory_space<vmem>>, vector<128x128xbf16>
    %cst = arith.constant dense<0.000000e+00> : vector<128x128xf32>
    %2 = tpu.matmul %0, %1, %cst {dimension_numbers = #tpu.dot_dimension_numbers<[1], [0], [0], [1], [0, 0, 1, 1], [], []>} : vector<128x128xbf16>, vector<128x128xbf16>, vector<128x128xf32> -> vector<128x128xf32>
    %c0_3 = arith.constant 0 : index
    %c0_4 = arith.constant 0 : index
    %3 = vector.load %arg3[%c0_3, %c0_4] : memref<128x128xbf16, #tpu.memory_space<vmem>>, vector<128x128xbf16>
    %cst_5 = arith.constant dense<0.000000e+00> : vector<128x128xf32>
    %4 = tpu.matmul %0, %3, %cst_5 {dimension_numbers = #tpu.dot_dimension_numbers<[1], [0], [0], [1], [0, 0, 1, 1], [], []>} : vector<128x128xbf16>, vector<128x128xbf16>, vector<128x128xf32> -> vector<128x128xf32>
    %c0_6 = arith.constant 0 : index
    %c0_7 = arith.constant 0 : index
    %5 = vector.load %arg4[%c0_6, %c0_7] : memref<128x128xf32, #tpu.memory_space<vmem>>, vector<128x128xf32>
    tpu.vector_store %arg4[%c0_6, %c0_7], %2 {strides = array<i32>} : memref<128x128xf32, #tpu.memory_space<vmem>>, vector<128x128xf32>,
    %c0_8 = arith.constant 0 : index
    %c0_9 = arith.constant 0 : index
    %6 = vector.load %arg5[%c0_8, %c0_9] : memref<128x128xf32, #tpu.memory_space<vmem>>, vector<128x128xf32>
    tpu.vector_store %arg5[%c0_8, %c0_9], %4 {strides = array<i32>} : memref<128x128xf32, #tpu.memory_space<vmem>>, vector<128x128xf32>,
    %cst_10 = arith.constant dense<0.000000e+00> : vector<128xf32>
    %7 = vector.multi_reduction <add>, %2, %cst_10 [0] : vector<128x128xf32> to vector<128xf32>
    %8 = vector.shape_cast %7 : vector<128xf32> to vector<1x128xf32>
    %9 = arith.mulf %2, %2 : vector<128x128xf32>
    %cst_11 = arith.constant dense<0.000000e+00> : vector<128xf32>
    %10 = vector.multi_reduction <add>, %9, %cst_11 [0] : vector<128x128xf32> to vector<128xf32>
    %11 = vector.shape_cast %10 : vector<128xf32> to vector<1x128xf32>
    %12 = tpu.concatenate %8, %11 in 0 : vector<1x128xf32>, vector<1x128xf32> -> vector<2x128xf32>
    %c0_12 = arith.constant 0 : index
    %c0_13 = arith.constant 0 : index
    %c0_14 = arith.constant 0 : index
    %13 = vector.load %arg6[%c0_12, %c0_13, %c0_14] : memref<1x2x128xf32, #tpu.memory_space<vmem>>, vector<1x2x128xf32>
    %14 = vector.shape_cast %13 : vector<1x2x128xf32> to vector<2x128xf32>
    %15 = vector.shape_cast %12 : vector<2x128xf32> to vector<1x2x128xf32>
    tpu.vector_store %arg6[%c0_12, %c0_13, %c0_14], %15 {strides = array<i32>} : memref<1x2x128xf32, #tpu.memory_space<vmem>>, vector<1x2x128xf32>,
    %cst_15 = arith.constant dense<0.000000e+00> : vector<128xf32>
    %16 = vector.multi_reduction <add>, %4, %cst_15 [0] : vector<128x128xf32> to vector<128xf32>
    %17 = vector.shape_cast %16 : vector<128xf32> to vector<1x128xf32>
    %18 = arith.mulf %4, %4 : vector<128x128xf32>
    %cst_16 = arith.constant dense<0.000000e+00> : vector<128xf32>
    %19 = vector.multi_reduction <add>, %18, %cst_16 [0] : vector<128x128xf32> to vector<128xf32>
    %20 = vector.shape_cast %19 : vector<128xf32> to vector<1x128xf32>
    %21 = tpu.concatenate %17, %20 in 0 : vector<1x128xf32>, vector<1x128xf32> -> vector<2x128xf32>
    %c0_17 = arith.constant 0 : index
    %c0_18 = arith.constant 0 : index
    %c0_19 = arith.constant 0 : index
    %22 = vector.load %arg7[%c0_17, %c0_18, %c0_19] : memref<1x2x128xf32, #tpu.memory_space<vmem>>, vector<1x2x128xf32>
    %23 = vector.shape_cast %22 : vector<1x2x128xf32> to vector<2x128xf32>
    %24 = vector.shape_cast %21 : vector<2x128xf32> to vector<1x2x128xf32>
    tpu.vector_store %arg7[%c0_17, %c0_18, %c0_19], %24 {strides = array<i32>} : memref<1x2x128xf32, #tpu.memory_space<vmem>>, vector<1x2x128xf32>,
    return
  }
  func.func @transform_0(%arg0: i32) -> (i32, i32) {
    %c0_i32 = arith.constant 0 : i32
    %c0_i32_0 = arith.constant 0 : i32
    return %arg0, %c0_i32 : i32, i32
  }
  func.func @transform_1(%arg0: i32) -> (i32, i32) {
    %c0_i32 = arith.constant 0 : i32
    %c0_i32_0 = arith.constant 0 : i32
    %c0_i32_1 = arith.constant 0 : i32
    return %c0_i32, %c0_i32_0 : i32, i32
  }
  func.func @transform_2(%arg0: i32) -> (i32, i32) {
    %c0_i32 = arith.constant 0 : i32
    %c0_i32_0 = arith.constant 0 : i32
    %c0_i32_1 = arith.constant 0 : i32
    return %c0_i32, %c0_i32_0 : i32, i32
  }
  func.func @transform_3(%arg0: i32) -> (i32, i32) {
    %c0_i32 = arith.constant 0 : i32
    %c0_i32_0 = arith.constant 0 : i32
    return %arg0, %c0_i32 : i32, i32
  }
  func.func @transform_4(%arg0: i32) -> (i32, i32) {
    %c0_i32 = arith.constant 0 : i32
    %c0_i32_0 = arith.constant 0 : i32
    return %arg0, %c0_i32 : i32, i32
  }
  func.func @transform_5(%arg0: i32) -> (i32, i32, i32) {
    %c0_i32 = arith.constant 0 : i32
    %c0_i32_0 = arith.constant 0 : i32
    %c0_i32_1 = arith.constant 0 : i32
    return %arg0, %c0_i32, %c0_i32_0 : i32, i32, i32
  }
  func.func @transform_6(%arg0: i32) -> (i32, i32, i32) {
    %c0_i32 = arith.constant 0 : i32
    %c0_i32_0 = arith.constant 0 : i32
    %c0_i32_1 = arith.constant 0 : i32
    return %arg0, %c0_i32, %c0_i32_0 : i32, i32, i32
  }
}

</mosaic_0001>

<llo_original>
// kernel: tpu_custom_call.1
$region0: #{tpu_custom_call.1}
  #allocation0 [shape = 'u32[]', space=smem, size = 0x4, offset = 0x4, fixed_abs, tag = 'smem constant byte address 0x4 - core index']
  #allocation1 [shape = 'u32[144,128]{1,0:T(1,128)}', space=vmem, size = 0x12000, scoped, tag = 'internal scratch']
  %s0 = inlined_call_operand.hbm [shape: bf16[512,128], index: 0, kind: input, shape index: {}]
  %s1 = inlined_call_operand.hbm [shape: bf16[128,128], index: 1, kind: input, shape index: {}]
  %s2 = inlined_call_operand.hbm [shape: bf16[128,128], index: 2, kind: input, shape index: {}]
  %s3 = inlined_call_operand.hbm [shape: f32[512,128], index: 3, kind: output, shape index: {0}]
  %s4 = inlined_call_operand.hbm [shape: f32[512,128], index: 4, kind: output, shape index: {1}]
  %s5 = inlined_call_operand.hbm [shape: f32[4,2,128], index: 5, kind: output, shape index: {2}]
  %s6 = inlined_call_operand.hbm [shape: f32[4,2,128], index: 6, kind: output, shape index: {3}]
  %7 = xla_tuple %s3, %s4, %s5, %s6
  %s8 = sld [smem:[#allocation0]]
  $region81: #{tpu_custom_call.1} parent=0
    _
  %s10 = ssub.s32 1, %s8
  %s11 = scalar_select 0, %s10, %s8
  $region1: #{tpu_custom_call.1} parent=0
    #allocation2 [shape = 'u8[65536]{0}', space=vmem, size = 0x10000, scoped, tag = 'input window, operand 0']
    #allocation3 [shape = 's32[2]{0}', space=sflag, size = 0x8, scoped, tag = 'scoped memory for tpu_custom_call.1']
    #allocation4 [shape = 's32[2]{0}', space=sflag, size = 0x8, scoped, tag = 'scoped memory for tpu_custom_call.1']
    #allocation5 [shape = 'u8[32768]{0}', space=vmem, size = 0x8000, scoped, tag = 'input window, operand 1, single buffered']
    #allocation6 [shape = 's32[1]{0}', space=sflag, size = 0x4, scoped, tag = 'scoped memory for tpu_custom_call.1']
    #allocation7 [shape = 'u8[32768]{0}', space=vmem, size = 0x8000, scoped, tag = 'input window, operand 2, single buffered']
    #allocation8 [shape = 'u8[131072]{0}', space=vmem, size = 0x20000, scoped, tag = 'output window, operand 0']
    #allocation9 [shape = 'u8[131072]{0}', space=vmem, size = 0x20000, scoped, tag = 'output window, operand 1']
    #allocation10 [shape = 's32[2]{0}', space=sflag, size = 0x8, scoped, tag = 'scoped memory for tpu_custom_call.1']
    #allocation11 [shape = 'u8[2048]{0}', space=vmem, size = 0x800, scoped, tag = 'output window, operand 2']
    #allocation12 [shape = 'u8[2048]{0}', space=vmem, size = 0x800, scoped, tag = 'output window, operand 3']
    #allocation13 [shape = 's32[2]{0}', space=sflag, size = 0x8, scoped, tag = 'scoped memory for tpu_custom_call.1']
    %12 = vsyncpa [#allocation3], 0
    %s13 = scalar_lea.sflag [#allocation3], 1
    %14 = vsyncpa %s13, 0
    %15 = vsyncpa [#allocation6], 0
    %16 = vsyncpa [#allocation4], 0
    %s17 = scalar_lea.sflag [#allocation4], 1
    %18 = vsyncpa %s17, 0
    %19 = vsyncpa [#allocation10], 0
    %s20 = scalar_lea.sflag [#allocation10], 1
    %21 = vsyncpa %s20, 0
    %22 = vsyncpa [#allocation13], 0
    %s23 = scalar_lea.sflag [#allocation13], 1
    %24 = vsyncpa %s23, 0
    loop: start=0, step=1, limit=6
    $region2: #{tpu_custom_call.1} parent=1 // loop_pre_header
      _
    $region3: #{tpu_custom_call.1} parent=1 // loop_header
      %s26 = sphi 0, %s30
      %p27 = scmp.ge.s32.totalorder %s26, 6
      %s36 = sphi 0, %s38
      %s39 = sphi 0, %s36
      %s40 = sphi 0, %s39
      %s56 = sphi 0, %s40
      %s60 = sphi 0, %s60
      %s62 = sphi 0, %s60
      %s63 = sphi 0, %s62
      %s77 = sphi 0, %s63
      %s81 = sphi 0, %s81
      %s83 = sphi 0, %s81
      %s84 = sphi 0, %s83
      %s98 = sphi 0, %s84
      %s104 = sphi 0, %s106
      %s107 = sphi 0, %s104
      %s108 = sphi 0, %s107
      %s124 = sphi 0, %s108
      %s130 = sphi 0, %s132
      %s133 = sphi 0, %s130
      %s134 = sphi 0, %s133
      %s150 = sphi 0, %s134
      %s156 = sphi 0, %s158
      %s159 = sphi 0, %s156
      %s160 = sphi 0, %s159
      %s176 = sphi 0, %s160
      %s182 = sphi 0, %s184
      %s185 = sphi 0, %s182
      %s186 = sphi 0, %s185
      %s202 = sphi 0, %s186
    $region4: #{tpu_custom_call.1} parent=1 // loop_header_branch
      %29 = sbr.rel (%p27) target = $region8
    $region5: #{tpu_custom_call.1} parent=1 // loop_body
      %s31 = ssub.s32 %s26, 1
      %s32 = ssub.s32 %s26, 2
      %s33 = sadd.s32 %s26, 1
      %s34 = ssub.s32 %s26, %s33
      %p35 = scmp.eq.s32.totalorder %s34, 0
      %s37 = sadd.s32 %s36, 1
      %s38 = scalar_select %p35, %s36, %s37
      %p41 = pneg %p35
      %p42 = scmp.eq.s32.totalorder %s26, 3
      %p43 = por %p41, %p42
      %p44 = scmp.ne.s32.totalorder %s36, %s39
      %p45 = scmp.eq.s32.totalorder %s26, 0
      %p46 = por %p44, %p45
      %p47 = scmp.ne.s32.totalorder %s36, %s39
      %p48 = scmp.eq.s32.totalorder %s31, 3
      %p49 = por %p47, %p48
      %p50 = scmp.ne.s32.totalorder %s39, %s40
      %p51 = scmp.eq.s32.totalorder %s31, 0
      %p52 = por %p50, %p51
      %p53 = scmp.ne.s32.totalorder %s39, %s40
      %p54 = scmp.eq.s32.totalorder %s32, 3
      %p55 = por %p53, %p54
      %p57 = scmp.ne.s32.totalorder %s40, %s56
      %p58 = scmp.eq.s32.totalorder %s32, 0
      %p59 = por %p57, %p58
      %s61 = sadd.s32 %s60, 1
      %p64 = scmp.eq.s32.totalorder %s26, 3
      %p65 = scmp.ne.s32.totalorder %s60, %s62
      %p66 = scmp.eq.s32.totalorder %s26, 0
      %p67 = por %p65, %p66
      %p68 = scmp.ne.s32.totalorder %s60, %s62
      %p69 = scmp.eq.s32.totalorder %s31, 3
      %p70 = por %p68, %p69
      %p71 = scmp.ne.s32.totalorder %s62, %s63
      %p72 = scmp.eq.s32.totalorder %s31, 0
      %p73 = por %p71, %p72
      %p74 = scmp.ne.s32.totalorder %s62, %s63
      %p75 = scmp.eq.s32.totalorder %s32, 3
      %p76 = por %p74, %p75
      %p78 = scmp.ne.s32.totalorder %s63, %s77
      %p79 = scmp.eq.s32.totalorder %s32, 0
      %p80 = por %p78, %p79
      %s82 = sadd.s32 %s81, 1
      %p85 = scmp.eq.s32.totalorder %s26, 3
      %p86 = scmp.ne.s32.totalorder %s81, %s83
      %p87 = scmp.eq.s32.totalorder %s26, 0
      %p88 = por %p86, %p87
      %p89 = scmp.ne.s32.totalorder %s81, %s83
      %p90 = scmp.eq.s32.totalorder %s31, 3
      %p91 = por %p89, %p90
      %p92 = scmp.ne.s32.totalorder %s83, %s84
      %p93 = scmp.eq.s32.totalorder %s31, 0
      %p94 = por %p92, %p93
      %p95 = scmp.ne.s32.totalorder %s83, %s84
      %p96 = scmp.eq.s32.totalorder %s32, 3
      %p97 = por %p95, %p96
      %p99 = scmp.ne.s32.totalorder %s84, %s98
      %p100 = scmp.eq.s32.totalorder %s32, 0
      %p101 = por %p99, %p100
      %s102 = ssub.s32 %s26, %s33
      %p103 = scmp.eq.s32.totalorder %s102, 0
      %s105 = sadd.s32 %s104, 1
      %s106 = scalar_select %p103, %s104, %s105
      %p109 = pneg %p103
      %p110 = scmp.eq.s32.totalorder %s26, 3
      %p111 = por %p109, %p110
      %p112 = scmp.ne.s32.totalorder %s104, %s107
      %p113 = scmp.eq.s32.totalorder %s26, 0
      %p114 = por %p112, %p113
      %p115 = scmp.ne.s32.totalorder %s104, %s107
      %p116 = scmp.eq.s32.totalorder %s31, 3
      %p117 = por %p115, %p116
      %p118 = scmp.ne.s32.totalorder %s107, %s108
      %p119 = scmp.eq.s32.totalorder %s31, 0
      %p120 = por %p118, %p119
      %p121 = scmp.ne.s32.totalorder %s107, %s108
      %p122 = scmp.eq.s32.totalorder %s32, 3
      %p123 = por %p121, %p122
      %p125 = scmp.ne.s32.totalorder %s108, %s124
      %p126 = scmp.eq.s32.totalorder %s32, 0
      %p127 = por %p125, %p126
      %s128 = ssub.s32 %s26, %s33
      %p129 = scmp.eq.s32.totalorder %s128, 0
      %s131 = sadd.s32 %s130, 1
      %s132 = scalar_select %p129, %s130, %s131
      %p135 = pneg %p129
      %p136 = scmp.eq.s32.totalorder %s26, 3
      %p137 = por %p135, %p136
      %p138 = scmp.ne.s32.totalorder %s130, %s133
      %p139 = scmp.eq.s32.totalorder %s26, 0
      %p140 = por %p138, %p139
      %p141 = scmp.ne.s32.totalorder %s130, %s133
      %p142 = scmp.eq.s32.totalorder %s31, 3
      %p143 = por %p141, %p142
      %p144 = scmp.ne.s32.totalorder %s133, %s134
      %p145 = scmp.eq.s32.totalorder %s31, 0
      %p146 = por %p144, %p145
      %p147 = scmp.ne.s32.totalorder %s133, %s134
      %p148 = scmp.eq.s32.totalorder %s32, 3
      %p149 = por %p147, %p148
      %p151 = scmp.ne.s32.totalorder %s134, %s150
      %p152 = scmp.eq.s32.totalorder %s32, 0
      %p153 = por %p151, %p152
      %s154 = ssub.s32 %s26, %s33
      %p155 = scmp.eq.s32.totalorder %s154, 0
      %s157 = sadd.s32 %s156, 1
      %s158 = scalar_select %p155, %s156, %s157
      %p161 = pneg %p155
      %p162 = scmp.eq.s32.totalorder %s26, 3
      %p163 = por %p161, %p162
      %p164 = scmp.ne.s32.totalorder %s156, %s159
      %p165 = scmp.eq.s32.totalorder %s26, 0
      %p166 = por %p164, %p165
      %p167 = scmp.ne.s32.totalorder %s156, %s159
      %p168 = scmp.eq.s32.totalorder %s31, 3
      %p169 = por %p167, %p168
      %p170 = scmp.ne.s32.totalorder %s159, %s160
      %p171 = scmp.eq.s32.totalorder %s31, 0
      %p172 = por %p170, %p171
      %p173 = scmp.ne.s32.totalorder %s159, %s160
      %p174 = scmp.eq.s32.totalorder %s32, 3
      %p175 = por %p173, %p174
      %p177 = scmp.ne.s32.totalorder %s160, %s176
      %p178 = scmp.eq.s32.totalorder %s32, 0
      %p179 = por %p177, %p178
      %s180 = ssub.s32 %s26, %s33
      %p181 = scmp.eq.s32.totalorder %s180, 0
      %s183 = sadd.s32 %s182, 1
      %s184 = scalar_select %p181, %s182, %s183
      %p187 = pneg %p181
      %p188 = scmp.eq.s32.totalorder %s26, 3
      %p189 = por %p187, %p188
      %p190 = scmp.ne.s32.totalorder %s182, %s185
      %p191 = scmp.eq.s32.totalorder %s26, 0
      %p192 = por %p190, %p191
      %p193 = scmp.ne.s32.totalorder %s182, %s185
      %p194 = scmp.eq.s32.totalorder %s31, 3
      %p195 = por %p193, %p194
      %p196 = scmp.ne.s32.totalorder %s185, %s186
      %p197 = scmp.eq.s32.totalorder %s31, 0
      %p198 = por %p196, %p197
      %p199 = scmp.ne.s32.totalorder %s185, %s186
      %p200 = scmp.eq.s32.totalorder %s32, 3
      %p201 = por %p199, %p200
      %p203 = scmp.ne.s32.totalorder %s186, %s202
      %p204 = scmp.eq.s32.totalorder %s32, 0
      %p205 = por %p203, %p204
      %p206 = scmp.le.s32.totalorder 1, %s26
      %p207 = scmp.lt.s32.totalorder %s26, 5
      %p208 = pnand %p206, %p207
      %p209 = pneg %p208
      // Predicated region
      $region9: #{tpu_custom_call.1} parent=5 // pred_check
        _
      $region10: #{tpu_custom_call.1} parent=5 // pred_check_branch
        %211 = sbr.rel (%p208) target = $region12
      $region11: #{tpu_custom_call.1} parent=5 // pred_region
        %s212 = ssub.s32 %s26, 1
        // Predicated region
        $region13: #{tpu_custom_call.1} parent=11 // pred_check
          %p213 = pneg %p73
        $region14: #{tpu_custom_call.1} parent=11 // pred_check_branch
          %215 = sbr.rel (%p213) target = $region16
        $region15: #{tpu_custom_call.1} parent=11 // pred_region
          %s217 = ssub.s32 1024, 1024
          %218 = vsyncadd [#allocation6], %s217
          %s219 = sshll.u32 [#allocation5], 4
          %s220 = int_to_ptr.vmem [resolvable:$true] %s219
          %225 = dma.hbm_to_vmem [thread:$0]  %s1, 1024, %s220, [#allocation6], 64, 64, 4
        $region16: #{tpu_custom_call.1} parent=11 // pred_fallthru
          _
        // Predicated region
        $region17: #{tpu_custom_call.1} parent=11 // pred_check
          %p226 = pneg %p94
        $region18: #{tpu_custom_call.1} parent=11 // pred_check_branch
          %228 = sbr.rel (%p226) target = $region20
        $region19: #{tpu_custom_call.1} parent=11 // pred_region
          %s230 = ssub.s32 1024, 1024
          %231 = vsyncadd [#allocation6], %s230
          %s232 = sshll.u32 [#allocation7], 4
          %s233 = int_to_ptr.vmem [resolvable:$true] %s232
          %238 = dma.hbm_to_vmem [thread:$0]  %s2, 1024, %s233, [#allocation6], 64, 64, 4
        $region20: #{tpu_custom_call.1} parent=11 // pred_fallthru
          _
      $region12: #{tpu_custom_call.1} parent=5 // pred_fallthru
        _
      %p239 = scmp.lt.s32.totalorder %s26, 4
      // Predicated region
      $region21: #{tpu_custom_call.1} parent=5 // pred_check
        %p240 = pneg %p239
      $region22: #{tpu_custom_call.1} parent=5 // pred_check_branch
        %242 = sbr.rel (%p240) target = $region24
      $region23: #{tpu_custom_call.1} parent=5 // pred_region
        // Predicated region
        $region25: #{tpu_custom_call.1} parent=23 // pred_check
          %p243 = pneg %p46
        $region26: #{tpu_custom_call.1} parent=23 // pred_check_branch
          %245 = sbr.rel (%p243) target = $region28
        $region27: #{tpu_custom_call.1} parent=23 // pred_region
          %s246 = sand.u32 %s36, 1
          %s247 = scalar_lea.sflag [#allocation3], %s246
          %s248 = sand.u32 %s36, 1
          %s249 = smul.addr %s248, 64
          %s250 = scalar_lea.vmem [#allocation2], %s249
          %s251 = smul.u32 16, %s26
          %s253 = ssub.s32 1024, 1024
          %254 = vsyncadd %s247, %s253
          %s255 = smul.addr %s251, 64
          %s256 = scalar_lea.hbm %s0, %s255
          %s257 = sshll.u32 %s250, 4
          %s258 = int_to_ptr.vmem [resolvable:$true] %s257
          %263 = dma.hbm_to_vmem [thread:$0]  %s256, 1024, %s258, %s247, 64, 64, 4
        $region28: #{tpu_custom_call.1} parent=23 // pred_fallthru
          _
      $region24: #{tpu_custom_call.1} parent=5 // pred_fallthru
        _
      %p264 = scmp.le.s32.totalorder 1, %s26
      %p265 = scmp.lt.s32.totalorder %s26, 5
      %p266 = pnand %p264, %p265
      %p267 = pneg %p266
      // Predicated region
      $region29: #{tpu_custom_call.1} parent=5 // pred_check
        _
      $region30: #{tpu_custom_call.1} parent=5 // pred_check_branch
        %269 = sbr.rel (%p266) target = $region32
      $region31: #{tpu_custom_call.1} parent=5 // pred_region
        %s270 = ssub.s32 %s26, 1
        %s271 = sand.u32 %s39, 1
        %s272 = scalar_lea.sflag [#allocation3], %s271
        %s273 = sand.u32 %s39, 1
        %s274 = smul.addr %s273, 64
        %s275 = scalar_lea.vmem [#allocation2], %s274
        // Predicated region
        $region33: #{tpu_custom_call.1} parent=31 // pred_check
          %p276 = pneg %p52
        $region34: #{tpu_custom_call.1} parent=31 // pred_check_branch
          %278 = sbr.rel (%p276) target = $region36
        $region35: #{tpu_custom_call.1} parent=31 // pred_region
          %279 = dma.done %s272, 1024
        $region36: #{tpu_custom_call.1} parent=31 // pred_fallthru
          _
        // Predicated region
        $region37: #{tpu_custom_call.1} parent=31 // pred_check
          %p280 = pneg %p73
        $region38: #{tpu_custom_call.1} parent=31 // pred_check_branch
          %282 = sbr.rel (%p280) target = $region40
        $region39: #{tpu_custom_call.1} parent=31 // pred_region
          %283 = dma.done [#allocation6], 1024
        $region40: #{tpu_custom_call.1} parent=31 // pred_fallthru
          _
        // Predicated region
        $region41: #{tpu_custom_call.1} parent=31 // pred_check
          %p284 = pneg %p94
        $region42: #{tpu_custom_call.1} parent=31 // pred_check_branch
          %286 = sbr.rel (%p284) target = $region44
        $region43: #{tpu_custom_call.1} parent=31 // pred_region
          %287 = dma.done [#allocation6], 1024
        $region44: #{tpu_custom_call.1} parent=31 // pred_fallthru
          _
        %s288 = sand.u32 %s39, 1
        %s289 = scalar_lea.sflag [#allocation3], %s288
        %s290 = sand.u32 %s39, 1
        %s291 = smul.addr %s290, 64
        %s292 = scalar_lea.vmem [#allocation2], %s291
        %p293 = pneg %p52
        %p294 = pneg %p49
        %p295 = pneg %p73
        %p296 = pneg %p70
        %p297 = pneg %p94
        %p298 = pneg %p91
        %p299 = pneg %p120
        %p300 = pneg %p117
        %s301 = sand.u32 %s107, 1
        %s302 = scalar_lea.sflag [#allocation4], %s301
        %s303 = sand.u32 %s107, 1
        %s304 = smul.addr %s303, 128
        %s305 = scalar_lea.vmem [#allocation8], %s304
        %p306 = pneg %p146
        %p307 = pneg %p143
        %s308 = sand.u32 %s31, 1
        %s309 = scalar_lea.sflag [#allocation10], %s308
        %s310 = sand.u32 %s133, 1
        %s311 = smul.addr %s310, 128
        %s312 = scalar_lea.vmem [#allocation9], %s311
        %p313 = pneg %p172
        %p314 = pneg %p169
        %s315 = sand.u32 %s31, 1
        %s316 = scalar_lea.sflag [#allocation10], %s315
        %s317 = sand.u32 %s159, 1
        %s318 = smul.addr %s317, 2
        %s319 = scalar_lea.vmem [#allocation11], %s318
        %p320 = pneg %p198
        %p321 = pneg %p195
        %s322 = sand.u32 %s185, 1
        %s323 = scalar_lea.sflag [#allocation13], %s322
        %s324 = sand.u32 %s185, 1
        %s325 = smul.addr %s324, 2
        %s326 = scalar_lea.vmem [#allocation12], %s325
        %s327 = smul.u32 16, %s31
        %s328 = smul.u32 16, %s31
        %s329 = smul.u32 16, %s31
        %v331 = vld [vmem:[%s275] sm:$0xf]
        %v332 = vld [vmem:[%s275 + $0x4] sm:$0xf]
        %v333 = vld [vmem:[%s275 + $0x8] sm:$0xf]
        %v334 = vld [vmem:[%s275 + $0xc] sm:$0xf]
        %v335 = vld [vmem:[%s275 + $0x10] sm:$0xf]
        %v336 = vld [vmem:[%s275 + $0x14] sm:$0xf]
        %v337 = vld [vmem:[%s275 + $0x18] sm:$0xf]
        %v338 = vld [vmem:[%s275 + $0x1c] sm:$0xf]
        %v339 = vld [vmem:[%s275 + $0x20] sm:$0xf]
        %v340 = vld [vmem:[%s275 + $0x24] sm:$0xf]
        %v341 = vld [vmem:[%s275 + $0x28] sm:$0xf]
        %v342 = vld [vmem:[%s275 + $0x2c] sm:$0xf]
        %v343 = vld [vmem:[%s275 + $0x30] sm:$0xf]
        %v344 = vld [vmem:[%s275 + $0x34] sm:$0xf]
        %v345 = vld [vmem:[%s275 + $0x38] sm:$0xf]
        %v346 = vld [vmem:[%s275 + $0x3c] sm:$0xf]
        %v347 = vld [vmem:[#allocation5] sm:$0xf]
        %v348 = vld [vmem:[#allocation5 + $0x4] sm:$0xf]
        %v349 = vld [vmem:[#allocation5 + $0x8] sm:$0xf]
        %v350 = vld [vmem:[#allocation5 + $0xc] sm:$0xf]
        %v351 = vld [vmem:[#allocation5 + $0x10] sm:$0xf]
        %v352 = vld [vmem:[#allocation5 + $0x14] sm:$0xf]
        %v353 = vld [vmem:[#allocation5 + $0x18] sm:$0xf]
        %v354 = vld [vmem:[#allocation5 + $0x1c] sm:$0xf]
        %v355 = vld [vmem:[#allocation5 + $0x20] sm:$0xf]
        %v356 = vld [vmem:[#allocation5 + $0x24] sm:$0xf]
        %v357 = vld [vmem:[#allocation5 + $0x28] sm:$0xf]
        %v358 = vld [vmem:[#allocation5 + $0x2c] sm:$0xf]
        %v359 = vld [vmem:[#allocation5 + $0x30] sm:$0xf]
        %v360 = vld [vmem:[#allocation5 + $0x34] sm:$0xf]
        %v361 = vld [vmem:[#allocation5 + $0x38] sm:$0xf]
        %v362 = vld [vmem:[#allocation5 + $0x3c] sm:$0xf]
        %v379 = vunpack.c.l.b16 %v331
        %v380 = vunpack.c.l.b16 %v332
        %v381 = vunpack.c.l.b16 %v333
        %v382 = vunpack.c.l.b16 %v334
        %v383 = vunpack.c.l.b16 %v335
        %v384 = vunpack.c.l.b16 %v336
        %v385 = vunpack.c.l.b16 %v337
        %v386 = vunpack.c.l.b16 %v338
        %v387 = vunpack.c.l.b16 %v339
        %v388 = vunpack.c.l.b16 %v340
        %v389 = vunpack.c.l.b16 %v341
        %v390 = vunpack.c.l.b16 %v342
        %v391 = vunpack.c.l.b16 %v343
        %v392 = vunpack.c.l.b16 %v344
        %v393 = vunpack.c.l.b16 %v345
        %v394 = vunpack.c.l.b16 %v346
        %v395 = vpack.c.b16 %v380, %v379
        %v396 = vpack.c.b16 %v382, %v381
        %v397 = vpack.c.b16 %v384, %v383
        %v398 = vpack.c.b16 %v386, %v385
        %v399 = vpack.c.b16 %v388, %v387
        %v400 = vpack.c.b16 %v390, %v389
        %v401 = vpack.c.b16 %v392, %v391
        %v402 = vpack.c.b16 %v394, %v393
        %v427 = vunpack.c.l.b16 %v347
        %v428 = vunpack.c.l.b16 %v348
        %v429 = vunpack.c.l.b16 %v349
        %v430 = vunpack.c.l.b16 %v350
        %v431 = vunpack.c.l.b16 %v351
        %v432 = vunpack.c.l.b16 %v352
        %v433 = vunpack.c.l.b16 %v353
        %v434 = vunpack.c.l.b16 %v354
        %v435 = vunpack.c.l.b16 %v355
        %v436 = vunpack.c.l.b16 %v356
        %v437 = vunpack.c.l.b16 %v357
        %v438 = vunpack.c.l.b16 %v358
        %v439 = vunpack.c.l.b16 %v359
        %v440 = vunpack.c.l.b16 %v360
        %v441 = vunpack.c.l.b16 %v361
        %v442 = vunpack.c.l.b16 %v362
        %v443 = vpack.c.b16 %v428, %v427
        %v444 = vpack.c.b16 %v430, %v429
        %v445 = vpack.c.b16 %v432, %v431
        %v446 = vpack.c.b16 %v434, %v433
        %v447 = vpack.c.b16 %v436, %v435
        %v448 = vpack.c.b16 %v438, %v437
        %v449 = vpack.c.b16 %v440, %v439
        %v450 = vpack.c.b16 %v442, %v441
        %459 = vmatprep.subr.bf16.mxu0 0
        %460 = vmatpush1.bf16.msra.mxu0 %v443
        %461 = vmatprep.subr.bf16.mxu0 0
        %462 = vmatpush1.bf16.msra.mxu0 %v444
        %463 = vmatprep.subr.bf16.mxu0 0
        %464 = vmatpush1.bf16.msra.mxu0 %v445
        %465 = vmatprep.subr.bf16.mxu0 0
        %466 = vmatpush1.bf16.msra.mxu0 %v446
        %467 = vmatprep.subr.bf16.mxu0 0
        %468 = vmatpush1.bf16.msra.mxu0 %v447
        %469 = vmatprep.subr.bf16.mxu0 0
        %470 = vmatpush1.bf16.msra.mxu0 %v448
        %471 = vmatprep.subr.bf16.mxu0 0
        %472 = vmatpush1.bf16.msra.mxu0 %v449
        %473 = vmatprep.subr.bf16.mxu0 0
        %474 = vmatpush1.bf16.msra.mxu0 %v450
        %475 = vmatprep.subr.bf16.mxu0 0
        %476 = vmatpush1.bf16.msra.mxu0 0
        %477 = vmatprep.subr.bf16.mxu0 0
        %478 = vmatpush1.bf16.msra.mxu0 0
        %479 = vmatprep.subr.bf16.mxu0 0
        %480 = vmatpush1.bf16.msra.mxu0 0
        %481 = vmatprep.subr.bf16.mxu0 0
        %482 = vmatpush1.bf16.msra.mxu0 0
        %483 = vmatprep.subr.bf16.mxu0 0
        %484 = vmatpush1.bf16.msra.mxu0 0
        %485 = vmatprep.subr.bf16.mxu0 0
        %486 = vmatpush1.bf16.msra.mxu0 0
        %487 = vmatprep.subr.bf16.mxu0 0
        %488 = vmatpush1.bf16.msra.mxu0 0
        %489 = vmatprep.subr.bf16.mxu0 0
        %490 = vmatpush1.bf16.msra.mxu0 0
        %491 = vmatprep.mubr.bf16.mxu0 0
        %492 = vmatmul.mubr.bf16.gmra.mrb[0].mxu0 %v395
        %v493 = vpop.f32.mrb[0].mxu0
        %v494 = vadd.f32 0.0, %v493
        %v495 = vpop.f32.mrb[0].mxu0
        %v496 = vpop.f32.mrb[0].mxu0
        %v497 = vadd.f32 0.0, %v496
        %v498 = vpop.f32.mrb[0].mxu0
        %499 = vmatprep.mubr.bf16.mxu0 0
        %500 = vmatmul.mubr.bf16.gmra.mrb[0].mxu0 %v396
        %v501 = vpop.f32.mrb[0].mxu0
        %v502 = vadd.f32 0.0, %v501
        %v503 = vpop.f32.mrb[0].mxu0
        %v504 = vpop.f32.mrb[0].mxu0
        %v505 = vadd.f32 0.0, %v504
        %v506 = vpop.f32.mrb[0].mxu0
        %507 = vmatprep.mubr.bf16.mxu0 0
        %508 = vmatmul.mubr.bf16.gmra.mrb[0].mxu0 %v397
        %v509 = vpop.f32.mrb[0].mxu0
        %v510 = vadd.f32 0.0, %v509
        %v511 = vpop.f32.mrb[0].mxu0
        %v512 = vpop.f32.mrb[0].mxu0
        %v513 = vadd.f32 0.0, %v512
        %v514 = vpop.f32.mrb[0].mxu0
        %515 = vmatprep.mubr.bf16.mxu0 0
        %516 = vmatmul.mubr.bf16.gmra.mrb[0].mxu0 %v398
        %v517 = vpop.f32.mrb[0].mxu0
        %v518 = vadd.f32 0.0, %v517
        %v519 = vpop.f32.mrb[0].mxu0
        %v520 = vpop.f32.mrb[0].mxu0
        %v521 = vadd.f32 0.0, %v520
        %v522 = vpop.f32.mrb[0].mxu0
        %523 = vmatprep.mubr.bf16.mxu0 0
        %524 = vmatmul.mubr.bf16.gmra.mrb[0].mxu0 %v399
        %v525 = vpop.f32.mrb[0].mxu0
        %v526 = vadd.f32 0.0, %v525
        %v527 = vpop.f32.mrb[0].mxu0
        %v528 = vpop.f32.mrb[0].mxu0
        %v529 = vadd.f32 0.0, %v528
        %v530 = vpop.f32.mrb[0].mxu0
        %531 = vmatprep.mubr.bf16.mxu0 0
        %532 = vmatmul.mubr.bf16.gmra.mrb[0].mxu0 %v400
        %v533 = vpop.f32.mrb[0].mxu0
        %v534 = vadd.f32 0.0, %v533
        %v535 = vpop.f32.mrb[0].mxu0
        %v536 = vpop.f32.mrb[0].mxu0
        %v537 = vadd.f32 0.0, %v536
        %v538 = vpop.f32.mrb[0].mxu0
        %539 = vmatprep.mubr.bf16.mxu0 0
        %540 = vmatmul.mubr.bf16.gmra.mrb[0].mxu0 %v401
        %v541 = vpop.f32.mrb[0].mxu0
        %v542 = vadd.f32 0.0, %v541
        %v543 = vpop.f32.mrb[0].mxu0
        %v544 = vpop.f32.mrb[0].mxu0
        %v545 = vadd.f32 0.0, %v544
        %v546 = vpop.f32.mrb[0].mxu0
        %547 = vmatprep.mubr.bf16.mxu0 0
        %548 = vmatmul.mubr.bf16.gmra.mrb[0].mxu0 %v402
        %v549 = vpop.f32.mrb[0].mxu0
        %v550 = vadd.f32 0.0, %v549
        %v551 = vpop.f32.mrb[0].mxu0
        %v552 = vpop.f32.mrb[0].mxu0
        %v553 = vadd.f32 0.0, %v552
        %v554 = vpop.f32.mrb[0].mxu0
        %555 = vdwg.mxu0
        %v556 = vld [vmem:[#allocation7] sm:$0xf]
        %v557 = vld [vmem:[#allocation7 + $0x4] sm:$0xf]
        %v558 = vld [vmem:[#allocation7 + $0x8] sm:$0xf]
        %v559 = vld [vmem:[#allocation7 + $0xc] sm:$0xf]
        %v560 = vld [vmem:[#allocation7 + $0x10] sm:$0xf]
        %v561 = vld [vmem:[#allocation7 + $0x14] sm:$0xf]
        %v562 = vld [vmem:[#allocation7 + $0x18] sm:$0xf]
        %v563 = vld [vmem:[#allocation7 + $0x1c] sm:$0xf]
        %v564 = vld [vmem:[#allocation7 + $0x20] sm:$0xf]
        %v565 = vld [vmem:[#allocation7 + $0x24] sm:$0xf]
        %v566 = vld [vmem:[#allocation7 + $0x28] sm:$0xf]
        %v567 = vld [vmem:[#allocation7 + $0x2c] sm:$0xf]
        %v568 = vld [vmem:[#allocation7 + $0x30] sm:$0xf]
        %v569 = vld [vmem:[#allocation7 + $0x34] sm:$0xf]
        %v570 = vld [vmem:[#allocation7 + $0x38] sm:$0xf]
        %v571 = vld [vmem:[#allocation7 + $0x3c] sm:$0xf]
        %v588 = vunpack.c.l.b16 %v556
        %v589 = vunpack.c.l.b16 %v557
        %v590 = vunpack.c.l.b16 %v558
        %v591 = vunpack.c.l.b16 %v559
        %v592 = vunpack.c.l.b16 %v560
        %v593 = vunpack.c.l.b16 %v561
        %v594 = vunpack.c.l.b16 %v562
        %v595 = vunpack.c.l.b16 %v563
        %v596 = vunpack.c.l.b16 %v564
        %v597 = vunpack.c.l.b16 %v565
        %v598 = vunpack.c.l.b16 %v566
        %v599 = vunpack.c.l.b16 %v567
        %v600 = vunpack.c.l.b16 %v568
        %v601 = vunpack.c.l.b16 %v569
        %v602 = vunpack.c.l.b16 %v570
        %v603 = vunpack.c.l.b16 %v571
        %v604 = vpack.c.b16 %v589, %v588
        %v605 = vpack.c.b16 %v591, %v590
        %v606 = vpack.c.b16 %v593, %v592
        %v607 = vpack.c.b16 %v595, %v594
        %v608 = vpack.c.b16 %v597, %v596
        %v609 = vpack.c.b16 %v599, %v598
        %v610 = vpack.c.b16 %v601, %v600
        %v611 = vpack.c.b16 %v603, %v602
        %620 = vmatprep.subr.bf16.mxu0 0
        %621 = vmatpush1.bf16.msra.mxu0 %v604
        %622 = vmatprep.subr.bf16.mxu0 0
        %623 = vmatpush1.bf16.msra.mxu0 %v605
        %624 = vmatprep.subr.bf16.mxu0 0
        %625 = vmatpush1.bf16.msra.mxu0 %v606
        %626 = vmatprep.subr.bf16.mxu0 0
        %627 = vmatpush1.bf16.msra.mxu0 %v607
        %628 = vmatprep.subr.bf16.mxu0 0
        %629 = vmatpush1.bf16.msra.mxu0 %v608
        %630 = vmatprep.subr.bf16.mxu0 0
        %631 = vmatpush1.bf16.msra.mxu0 %v609
        %632 = vmatprep.subr.bf16.mxu0 0
        %633 = vmatpush1.bf16.msra.mxu0 %v610
        %634 = vmatprep.subr.bf16.mxu0 0
        %635 = vmatpush1.bf16.msra.mxu0 %v611
        %636 = vmatprep.subr.bf16.mxu0 0
        %637 = vmatpush1.bf16.msra.mxu0 0
        %638 = vmatprep.subr.bf16.mxu0 0
        %639 = vmatpush1.bf16.msra.mxu0 0
        %640 = vmatprep.subr.bf16.mxu0 0
        %641 = vmatpush1.bf16.msra.mxu0 0
        %642 = vmatprep.subr.bf16.mxu0 0
        %643 = vmatpush1.bf16.msra.mxu0 0
        %644 = vmatprep.subr.bf16.mxu0 0
        %645 = vmatpush1.bf16.msra.mxu0 0
        %646 = vmatprep.subr.bf16.mxu0 0
        %647 = vmatpush1.bf16.msra.mxu0 0
        %648 = vmatprep.subr.bf16.mxu0 0
        %649 = vmatpush1.bf16.msra.mxu0 0
        %650 = vmatprep.subr.bf16.mxu0 0
        %651 = vmatpush1.bf16.msra.mxu0 0
        %652 = vmatprep.mubr.bf16.mxu0 0
        %653 = vmatmul.mubr.bf16.gmra.mrb[0].mxu0 %v395
        %v654 = vpop.f32.mrb[0].mxu0
        %v655 = vadd.f32 0.0, %v654
        %v656 = vpop.f32.mrb[0].mxu0
        %v657 = vpop.f32.mrb[0].mxu0
        %v658 = vadd.f32 0.0, %v657
        %v659 = vpop.f32.mrb[0].mxu0
        %660 = vmatprep.mubr.bf16.mxu0 0
        %661 = vmatmul.mubr.bf16.gmra.mrb[0].mxu0 %v396
        %v662 = vpop.f32.mrb[0].mxu0
        %v663 = vadd.f32 0.0, %v662
        %v664 = vpop.f32.mrb[0].mxu0
        %v665 = vpop.f32.mrb[0].mxu0
        %v666 = vadd.f32 0.0, %v665
        %v667 = vpop.f32.mrb[0].mxu0
        %668 = vmatprep.mubr.bf16.mxu0 0
        %669 = vmatmul.mubr.bf16.gmra.mrb[0].mxu0 %v397
        %v670 = vpop.f32.mrb[0].mxu0
        %v671 = vadd.f32 0.0, %v670
        %v672 = vpop.f32.mrb[0].mxu0
        %v673 = vpop.f32.mrb[0].mxu0
        %v674 = vadd.f32 0.0, %v673
        %v675 = vpop.f32.mrb[0].mxu0
        %676 = vmatprep.mubr.bf16.mxu0 0
        %677 = vmatmul.mubr.bf16.gmra.mrb[0].mxu0 %v398
        %v678 = vpop.f32.mrb[0].mxu0
        %v679 = vadd.f32 0.0, %v678
        %v680 = vpop.f32.mrb[0].mxu0
        %v681 = vpop.f32.mrb[0].mxu0
        %v682 = vadd.f32 0.0, %v681
        %v683 = vpop.f32.mrb[0].mxu0
        %684 = vmatprep.mubr.bf16.mxu0 0
        %685 = vmatmul.mubr.bf16.gmra.mrb[0].mxu0 %v399
        %v686 = vpop.f32.mrb[0].mxu0
        %v687 = vadd.f32 0.0, %v686
        %v688 = vpop.f32.mrb[0].mxu0
        %v689 = vpop.f32.mrb[0].mxu0
        %v690 = vadd.f32 0.0, %v689
        %v691 = vpop.f32.mrb[0].mxu0
        %692 = vmatprep.mubr.bf16.mxu0 0
        %693 = vmatmul.mubr.bf16.gmra.mrb[0].mxu0 %v400
        %v694 = vpop.f32.mrb[0].mxu0
        %v695 = vadd.f32 0.0, %v694
        %v696 = vpop.f32.mrb[0].mxu0
        %v697 = vpop.f32.mrb[0].mxu0
        %v698 = vadd.f32 0.0, %v697
        %v699 = vpop.f32.mrb[0].mxu0
        %700 = vmatprep.mubr.bf16.mxu0 0
        %701 = vmatmul.mubr.bf16.gmra.mrb[0].mxu0 %v401
        %v702 = vpop.f32.mrb[0].mxu0
        %v703 = vadd.f32 0.0, %v702
        %v704 = vpop.f32.mrb[0].mxu0
        %v705 = vpop.f32.mrb[0].mxu0
        %v706 = vadd.f32 0.0, %v705
        %v707 = vpop.f32.mrb[0].mxu0
        %708 = vmatprep.mubr.bf16.mxu0 0
        %709 = vmatmul.mubr.bf16.gmra.mrb[0].mxu0 %v402
        %v710 = vpop.f32.mrb[0].mxu0
        %v711 = vadd.f32 0.0, %v710
        %v712 = vpop.f32.mrb[0].mxu0
        %v713 = vpop.f32.mrb[0].mxu0
        %v714 = vadd.f32 0.0, %v713
        %v715 = vpop.f32.mrb[0].mxu0
        %716 = vdwg.mxu0
        %717 = vst [vmem:[%s305] sm:$0xff] %v494
        %718 = vst [vmem:[%s305 + $0x8] sm:$0xff] %v497
        %719 = vst [vmem:[%s305 + $0x10] sm:$0xff] %v502
        %720 = vst [vmem:[%s305 + $0x18] sm:$0xff] %v505
        %721 = vst [vmem:[%s305 + $0x20] sm:$0xff] %v510
        %722 = vst [vmem:[%s305 + $0x28] sm:$0xff] %v513
        %723 = vst [vmem:[%s305 + $0x30] sm:$0xff] %v518
        %724 = vst [vmem:[%s305 + $0x38] sm:$0xff] %v521
        %725 = vst [vmem:[%s305 + $0x40] sm:$0xff] %v526
        %726 = vst [vmem:[%s305 + $0x48] sm:$0xff] %v529
        %727 = vst [vmem:[%s305 + $0x50] sm:$0xff] %v534
        %728 = vst [vmem:[%s305 + $0x58] sm:$0xff] %v537
        %729 = vst [vmem:[%s305 + $0x60] sm:$0xff] %v542
        %730 = vst [vmem:[%s305 + $0x68] sm:$0xff] %v545
        %731 = vst [vmem:[%s305 + $0x70] sm:$0xff] %v550
        %732 = vst [vmem:[%s305 + $0x78] sm:$0xff] %v553
        %733 = vst [vmem:[%s312] sm:$0xff] %v655
        %734 = vst [vmem:[%s312 + $0x8] sm:$0xff] %v658
        %735 = vst [vmem:[%s312 + $0x10] sm:$0xff] %v663
        %736 = vst [vmem:[%s312 + $0x18] sm:$0xff] %v666
        %737 = vst [vmem:[%s312 + $0x20] sm:$0xff] %v671
        %738 = vst [vmem:[%s312 + $0x28] sm:$0xff] %v674
        %739 = vst [vmem:[%s312 + $0x30] sm:$0xff] %v679
        %740 = vst [vmem:[%s312 + $0x38] sm:$0xff] %v682
        %741 = vst [vmem:[%s312 + $0x40] sm:$0xff] %v687
        %742 = vst [vmem:[%s312 + $0x48] sm:$0xff] %v690
        %743 = vst [vmem:[%s312 + $0x50] sm:$0xff] %v695
        %744 = vst [vmem:[%s312 + $0x58] sm:$0xff] %v698
        %745 = vst [vmem:[%s312 + $0x60] sm:$0xff] %v703
        %746 = vst [vmem:[%s312 + $0x68] sm:$0xff] %v706
        %747 = vst [vmem:[%s312 + $0x70] sm:$0xff] %v711
        %748 = vst [vmem:[%s312 + $0x78] sm:$0xff] %v714
        %v749 = vadd.f32 %v494, %v497
        %v750 = vadd.f32 %v749, %v502
        %v751 = vadd.f32 %v750, %v505
        %v752 = vadd.f32 %v751, %v510
        %v753 = vadd.f32 %v752, %v513
        %v754 = vadd.f32 %v753, %v518
        %v755 = vadd.f32 %v754, %v521
        %v756 = vadd.f32 %v755, %v526
        %v757 = vadd.f32 %v756, %v529
        %v758 = vadd.f32 %v757, %v534
        %v759 = vadd.f32 %v758, %v537
        %v760 = vadd.f32 %v759, %v542
        %v761 = vadd.f32 %v760, %v545
        %v762 = vadd.f32 %v761, %v550
        %v763 = vadd.f32 %v762, %v553
        %v764 = vrot.slane %v763, 4
        %v765 = vadd.f32 %v763, %v764
        %v766 = vrot.slane %v765, 2
        %v767 = vadd.f32 %v765, %v766
        %v768 = vrot.slane %v767, 1
        %v769 = vadd.f32 %v767, %v768
        %v770 = vmul.f32 %v494, %v494
        %v771 = vmul.f32 %v497, %v497
        %v772 = vmul.f32 %v502, %v502
        %v773 = vmul.f32 %v505, %v505
        %v774 = vmul.f32 %v510, %v510
        %v775 = vmul.f32 %v513, %v513
        %v776 = vmul.f32 %v518, %v518
        %v777 = vmul.f32 %v521, %v521
        %v778 = vmul.f32 %v526, %v526
        %v779 = vmul.f32 %v529, %v529
        %v780 = vmul.f32 %v534, %v534
        %v781 = vmul.f32 %v537, %v537
        %v782 = vmul.f32 %v542, %v542
        %v783 = vmul.f32 %v545, %v545
        %v784 = vmul.f32 %v550, %v550
        %v785 = vmul.f32 %v553, %v553
        %v786 = vadd.f32 %v770, %v771
        %v787 = vadd.f32 %v786, %v772
        %v788 = vadd.f32 %v787, %v773
        %v789 = vadd.f32 %v788, %v774
        %v790 = vadd.f32 %v789, %v775
        %v791 = vadd.f32 %v790, %v776
        %v792 = vadd.f32 %v791, %v777
        %v793 = vadd.f32 %v792, %v778
        %v794 = vadd.f32 %v793, %v779
        %v795 = vadd.f32 %v794, %v780
        %v796 = vadd.f32 %v795, %v781
        %v797 = vadd.f32 %v796, %v782
        %v798 = vadd.f32 %v797, %v783
        %v799 = vadd.f32 %v798, %v784
        %v800 = vadd.f32 %v799, %v785
        %v801 = vrot.slane %v800, 4
        %v802 = vadd.f32 %v800, %v801
        %v803 = vrot.slane %v802, 2
        %v804 = vadd.f32 %v802, %v803
        %v805 = vrot.slane %v804, 1
        %v806 = vadd.f32 %v804, %v805
        %vm807 = vcmask 1040384
        %v808 = vsel %vm807, %v769, %v806
        %809 = vst [vmem:[%s319] sm:$0x3] %v808
        %v810 = vadd.f32 %v655, %v658
        %v811 = vadd.f32 %v810, %v663
        %v812 = vadd.f32 %v811, %v666
        %v813 = vadd.f32 %v812, %v671
        %v814 = vadd.f32 %v813, %v674
        %v815 = vadd.f32 %v814, %v679
        %v816 = vadd.f32 %v815, %v682
        %v817 = vadd.f32 %v816, %v687
        %v818 = vadd.f32 %v817, %v690
        %v819 = vadd.f32 %v818, %v695
        %v820 = vadd.f32 %v819, %v698
        %v821 = vadd.f32 %v820, %v703
        %v822 = vadd.f32 %v821, %v706
        %v823 = vadd.f32 %v822, %v711
        %v824 = vadd.f32 %v823, %v714
        %v825 = vrot.slane %v824, 4
        %v826 = vadd.f32 %v824, %v825
        %v827 = vrot.slane %v826, 2
        %v828 = vadd.f32 %v826, %v827
        %v829 = vrot.slane %v828, 1
        %v830 = vadd.f32 %v828, %v829
        %v831 = vmul.f32 %v655, %v655
        %v832 = vmul.f32 %v658, %v658
        %v833 = vmul.f32 %v663, %v663
        %v834 = vmul.f32 %v666, %v666
        %v835 = vmul.f32 %v671, %v671
        %v836 = vmul.f32 %v674, %v674
        %v837 = vmul.f32 %v679, %v679
        %v838 = vmul.f32 %v682, %v682
        %v839 = vmul.f32 %v687, %v687
        %v840 = vmul.f32 %v690, %v690
        %v841 = vmul.f32 %v695, %v695
        %v842 = vmul.f32 %v698, %v698
        %v843 = vmul.f32 %v703, %v703
        %v844 = vmul.f32 %v706, %v706
        %v845 = vmul.f32 %v711, %v711
        %v846 = vmul.f32 %v714, %v714
        %v847 = vadd.f32 %v831, %v832
        %v848 = vadd.f32 %v847, %v833
        %v849 = vadd.f32 %v848, %v834
        %v850 = vadd.f32 %v849, %v835
        %v851 = vadd.f32 %v850, %v836
        %v852 = vadd.f32 %v851, %v837
        %v853 = vadd.f32 %v852, %v838
        %v854 = vadd.f32 %v853, %v839
        %v855 = vadd.f32 %v854, %v840
        %v856 = vadd.f32 %v855, %v841
        %v857 = vadd.f32 %v856, %v842
        %v858 = vadd.f32 %v857, %v843
        %v859 = vadd.f32 %v858, %v844
        %v860 = vadd.f32 %v859, %v845
        %v861 = vadd.f32 %v860, %v846
        %v862 = vrot.slane %v861, 4
        %v863 = vadd.f32 %v861, %v862
        %v864 = vrot.slane %v863, 2
        %v865 = vadd.f32 %v863, %v864
        %v866 = vrot.slane %v865, 1
        %v867 = vadd.f32 %v865, %v866
        %v868 = vsel %vm807, %v830, %v867
        %869 = vst [vmem:[%s326] sm:$0x3] %v868
        %s870 = sand.u32 %s107, 1
        %s871 = scalar_lea.sflag [#allocation4], %s870
        %s872 = sand.u32 %s107, 1
        %s873 = smul.addr %s872, 128
        %s874 = scalar_lea.vmem [#allocation8], %s873
        %s875 = sand.u32 %s31, 1
        %s876 = scalar_lea.sflag [#allocation10], %s875
        %s877 = sand.u32 %s133, 1
        %s878 = smul.addr %s877, 128
        %s879 = scalar_lea.vmem [#allocation9], %s878
        %s880 = sand.u32 %s31, 1
        %s881 = scalar_lea.sflag [#allocation10], %s880
        %s882 = sand.u32 %s159, 1
        %s883 = smul.addr %s882, 2
        %s884 = scalar_lea.vmem [#allocation11], %s883
        %s885 = sand.u32 %s185, 1
        %s886 = scalar_lea.sflag [#allocation13], %s885
        %s887 = sand.u32 %s185, 1
        %s888 = smul.addr %s887, 2
        %s889 = scalar_lea.vmem [#allocation12], %s888
        // Predicated region
        $region45: #{tpu_custom_call.1} parent=31 // pred_check
          %p890 = pneg %p117
        $region46: #{tpu_custom_call.1} parent=31 // pred_check_branch
          %892 = sbr.rel (%p890) target = $region48
        $region47: #{tpu_custom_call.1} parent=31 // pred_region
          %s893 = smul.u32 16, %s31
          %s895 = ssub.s32 2048, 2048
          %896 = vsyncadd %s871, %s895
          %s897 = smul.addr %s893, 128
          %s898 = scalar_lea.hbm %s3, %s897
          %s899 = sshll.u32 %s874, 4
          %s900 = int_to_ptr.vmem [resolvable:$true] %s899
          %905 = dma.vmem_to_hbm [thread:$0]  %s900, 2048, %s898, %s871, 128, 128, 8
        $region48: #{tpu_custom_call.1} parent=31 // pred_fallthru
          _
        // Predicated region
        $region49: #{tpu_custom_call.1} parent=31 // pred_check
          %p906 = pneg %p143
        $region50: #{tpu_custom_call.1} parent=31 // pred_check_branch
          %908 = sbr.rel (%p906) target = $region52
        $region51: #{tpu_custom_call.1} parent=31 // pred_region
          %s909 = smul.u32 16, %s31
          %s911 = ssub.s32 2048, 2048
          %912 = vsyncadd %s876, %s911
          %s913 = smul.addr %s909, 128
          %s914 = scalar_lea.hbm %s4, %s913
          %s915 = sshll.u32 %s879, 4
          %s916 = int_to_ptr.vmem [resolvable:$true] %s915
          %921 = dma.vmem_to_hbm [thread:$0]  %s916, 2048, %s914, %s876, 128, 128, 8
        $region52: #{tpu_custom_call.1} parent=31 // pred_fallthru
          _
        // Predicated region
        $region53: #{tpu_custom_call.1} parent=31 // pred_check
          %p922 = pneg %p169
        $region54: #{tpu_custom_call.1} parent=31 // pred_check_branch
          %924 = sbr.rel (%p922) target = $region56
        $region55: #{tpu_custom_call.1} parent=31 // pred_region
          %s926 = ssub.s32 32, 32
          %927 = vsyncadd %s881, %s926
          %s928 = smul.addr %s31, 32
          %s929 = scalar_lea.hbm %s5, %s928
          %s931 = sshll.u32 %s884, 4
          %s932 = int_to_ptr.vmem [resolvable:$true] %s931
          %934 = dma.vmem_to_hbm [thread:$0]  %s932, 32, %s929, %s881
        $region56: #{tpu_custom_call.1} parent=31 // pred_fallthru
          _
        // Predicated region
        $region57: #{tpu_custom_call.1} parent=31 // pred_check
          %p935 = pneg %p195
        $region58: #{tpu_custom_call.1} parent=31 // pred_check_branch
          %937 = sbr.rel (%p935) target = $region60
        $region59: #{tpu_custom_call.1} parent=31 // pred_region
          %s939 = ssub.s32 32, 32
          %940 = vsyncadd %s886, %s939
          %s941 = smul.addr %s31, 32
          %s942 = scalar_lea.hbm %s6, %s941
          %s944 = sshll.u32 %s889, 4
          %s945 = int_to_ptr.vmem [resolvable:$true] %s944
          %947 = dma.vmem_to_hbm [thread:$0]  %s945, 32, %s942, %s886
        $region60: #{tpu_custom_call.1} parent=31 // pred_fallthru
          _
      $region32: #{tpu_custom_call.1} parent=5 // pred_fallthru
        _
      %p948 = scmp.le.s32.totalorder 2, %s26
      // Predicated region
      $region61: #{tpu_custom_call.1} parent=5 // pred_check
        %p949 = pneg %p948
      $region62: #{tpu_custom_call.1} parent=5 // pred_check_branch
        %951 = sbr.rel (%p949) target = $region64
      $region63: #{tpu_custom_call.1} parent=5 // pred_region
        %s952 = ssub.s32 %s26, 2
        // Predicated region
        $region65: #{tpu_custom_call.1} parent=63 // pred_check
          %p953 = pneg %p123
        $region66: #{tpu_custom_call.1} parent=63 // pred_check_branch
          %955 = sbr.rel (%p953) target = $region68
        $region67: #{tpu_custom_call.1} parent=63 // pred_region
          %s956 = sand.u32 %s108, 1
          %s957 = scalar_lea.sflag [#allocation4], %s956
          %s958 = sand.u32 %s108, 1
          %s959 = smul.addr %s958, 128
          %s960 = scalar_lea.vmem [#allocation8], %s959
          %961 = dma.done %s957, 2048
        $region68: #{tpu_custom_call.1} parent=63 // pred_fallthru
          _
        // Predicated region
        $region69: #{tpu_custom_call.1} parent=63 // pred_check
          %p962 = pneg %p149
        $region70: #{tpu_custom_call.1} parent=63 // pred_check_branch
          %964 = sbr.rel (%p962) target = $region72
        $region71: #{tpu_custom_call.1} parent=63 // pred_region
          %s965 = sand.u32 %s32, 1
          %s966 = scalar_lea.sflag [#allocation10], %s965
          %s967 = sand.u32 %s134, 1
          %s968 = smul.addr %s967, 128
          %s969 = scalar_lea.vmem [#allocation9], %s968
          %970 = dma.done %s966, 2048
        $region72: #{tpu_custom_call.1} parent=63 // pred_fallthru
          _
        // Predicated region
        $region73: #{tpu_custom_call.1} parent=63 // pred_check
          %p971 = pneg %p175
        $region74: #{tpu_custom_call.1} parent=63 // pred_check_branch
          %973 = sbr.rel (%p971) target = $region76
        $region75: #{tpu_custom_call.1} parent=63 // pred_region
          %s974 = sand.u32 %s32, 1
          %s975 = scalar_lea.sflag [#allocation10], %s974
          %s976 = sand.u32 %s160, 1
          %s977 = smul.addr %s976, 2
          %s978 = scalar_lea.vmem [#allocation11], %s977
          %979 = dma.done %s975, 32
        $region76: #{tpu_custom_call.1} parent=63 // pred_fallthru
          _
        // Predicated region
        $region77: #{tpu_custom_call.1} parent=63 // pred_check
          %p980 = pneg %p201
        $region78: #{tpu_custom_call.1} parent=63 // pred_check_branch
          %982 = sbr.rel (%p980) target = $region80
        $region79: #{tpu_custom_call.1} parent=63 // pred_region
          %s983 = sand.u32 %s186, 1
          %s984 = scalar_lea.sflag [#allocation13], %s983
          %s985 = sand.u32 %s186, 1
          %s986 = smul.addr %s985, 2
          %s987 = scalar_lea.vmem [#allocation12], %s986
          %988 = dma.done %s984, 32
        $region80: #{tpu_custom_call.1} parent=63 // pred_fallthru
          _
      $region64: #{tpu_custom_call.1} parent=5 // pred_fallthru
        _
    $region6: #{tpu_custom_call.1} parent=1 // loop_footer
      %s30 = sadd.s32 1, %s26
    $region7: #{tpu_custom_call.1} parent=1 // loop_footer_branch
      %25 = sbr.rel target = $region3
    $region8: #{tpu_custom_call.1} parent=1 // loop_exit
      _
    %989 = vsyncpa [#allocation3], 1
    %s990 = scalar_lea.sflag [#allocation3], 1
    %991 = vsyncpa %s990, 1
    %992 = vsyncpa [#allocation6], 1
    %993 = vsyncpa [#allocation4], 1
    %s994 = scalar_lea.sflag [#allocation4], 1
    %995 = vsyncpa %s994, 1
    %996 = vsyncpa [#allocation10], 1
    %s997 = scalar_lea.sflag [#allocation10], 1
    %998 = vsyncpa %s997, 1
    %999 = vsyncpa [#allocation13], 1
    %s1000 = scalar_lea.sflag [#allocation13], 1
    %1001 = vsyncpa %s1000, 1

</llo_original>
